<compile_context>
chip_gen: v7x
topology: tpu7x:2x2x1
jax: 0.10.0
libtpu: 0.0.40
codegen_flags: <defaults>
</compile_context>

<pallas_src>
import functools

import jax
import jax.numpy as jnp
from jax.experimental import pallas as pl
from jax.experimental.pallas import tpu as pltpu

_LANES = 128
_SUBLANES = 8


def _pow_sum_kernel(x_ref, out_ref, *, norm_p):
    """x_ref: (tile_rows, 128) tile.  out_ref: (1, 8, 128) resident accumulator."""
    @pl.when(pl.program_id(1) == 0)
    def _():
        out_ref[...] = jnp.zeros_like(out_ref)

    e = x_ref[...].astype(jnp.float32)                  # (tile_rows, 128)
    p = float(norm_p)
    if p == 1.0:
        ep = jnp.abs(e)
    elif p == 2.0:
        ep = e * e
    elif p == float(int(p)):                            # integer p: VPU multiplies
        a = jnp.abs(e)
        ep = a
        for _ in range(int(p) - 1):
            ep = ep * a
    else:
        ep = jnp.abs(e) ** p                            # fractional p: EUP pow

    tile_rows = e.shape[0]
    # Vreg-group partial sums: (T/8, 8, 128) summed over the leading axis is
    # pure VPU adds; the cross-sublane/lane reduction happens once per layer
    # in the wrapper (outside the hot loop).
    partial = jnp.sum(ep.reshape(tile_rows // _SUBLANES, _SUBLANES, _LANES), axis=0)
    out_ref[...] += partial[None]


def _layer_pow_sum(x, norm_p, tile_rows, tiles_per_split, num_splits):
    """sum(|x|^p) for one padded (rows, 128) layer slab, streamed via Pallas."""
    itemsize = jnp.dtype(x.dtype).itemsize
    tile_bytes = tile_rows * _LANES * itemsize
    # double-buffered input + small output + headroom; well under scoped VMEM
    # defaults on v5e/v6e/v7x.
    vmem_limit = int(min(32 << 20, max(4 << 20, 4 * tile_bytes + (2 << 20))))
    is_frac = norm_p not in (1.0, 2.0) and norm_p != float(int(norm_p))

    out = pl.pallas_call(
        functools.partial(_pow_sum_kernel, norm_p=float(norm_p)),
        out_shape=jax.ShapeDtypeStruct((num_splits, _SUBLANES, _LANES), jnp.float32),
        grid_spec=pltpu.PrefetchScalarGridSpec(
            num_scalar_prefetch=0,
            grid=(num_splits, tiles_per_split),
            in_specs=[pl.BlockSpec((tile_rows, _LANES),
                                   lambda c, t: (c * tiles_per_split + t, 0))],
            out_specs=pl.BlockSpec((1, _SUBLANES, _LANES), lambda c, t: (c, 0, 0)),
        ),
        compiler_params=pltpu.CompilerParams(
            dimension_semantics=("parallel", "arbitrary"),
            vmem_limit_bytes=vmem_limit,
        ),
        cost_estimate=pl.CostEstimate(
            flops=2 * int(x.size),
            transcendentals=2 * int(x.size) if is_frac else 0,
            bytes_accessed=int(x.size) * itemsize + num_splits * _SUBLANES * _LANES * 4,
        ),
    )(x)
    return jnp.sum(out)                                  # (splits, 8, 128) -> scalar


def _emb_loss_jax(embeddings, norm_p, require_pow):
    """Tiny-input fast path: plain JAX, same semantics."""
    n_last = embeddings[-1].shape[0]
    pow_sums = [jnp.sum(jnp.abs(e.astype(jnp.float32)) ** norm_p) for e in embeddings]
    if require_pow:
        return sum(pow_sums) / n_last / norm_p
    return sum(s ** (1.0 / norm_p) for s in pow_sums) / n_last


def emb_loss(embeddings, *, norm_p, require_pow=False,
             tile_bytes_target=2 << 20, small_threshold=1 << 18):
    """Pallas equivalent of EmbLoss.forward(embeddings, require_pow)."""
    # TODO(synk): if L separate launches ever dominate, switch to one ragged
    # flat slab driven by PrefetchScalarGridSpec(num_scalar_prefetch=1)
    # per-layer tile-offset index_maps (single launch).
    norm_p = float(norm_p)
    if norm_p <= 0.0:
        raise ValueError("norm_p must be > 0 (zero padding assumes 0**p == 0)")
    embeddings = [jnp.asarray(e) for e in embeddings]
    n_last_rows = embeddings[-1].shape[0]
    total_elems = sum(int(e.size) for e in embeddings)

    # Tiny inputs: launch + padding cost dwarfs the reduction; do it in JAX.
    if total_elems <= small_threshold:
        return _emb_loss_jax(embeddings, norm_p, require_pow)

    layer_pow_sums = []
    for e in embeddings:
        n = int(e.size)
        if n == 0:
            layer_pow_sums.append(jnp.float32(0.0))
            continue
        itemsize = jnp.dtype(e.dtype).itemsize
        # Native sublane granule for this dtype (f32: 8, bf16: 16, int8: 32).
        row_mult = _SUBLANES * max(1, 4 // itemsize)
        # ~2 MiB tiles amortize the ~0.35us per-grid-step overhead.
        tile_rows = max(row_mult,
                        (tile_bytes_target // (_LANES * itemsize))
                        // row_mult * row_mult)
        rows = -(-n // _LANES)
        tile_rows = min(tile_rows, -(-rows // row_mult) * row_mult)
        num_tiles = -(-rows // tile_rows)
        # Split the row-tile range in two so v7x megacore can shard it.
        num_splits = 2 if num_tiles >= 2 else 1
        num_tiles = -(-num_tiles // num_splits) * num_splits
        tiles_per_split = num_tiles // num_splits
        rows_padded = num_tiles * tile_rows
        padded = rows_padded * _LANES

        flat = e.reshape(-1)                              # native dtype kept
        if padded != n:
            flat = jnp.pad(flat, (0, padded - n))         # zeros: 0**p == 0
        x = flat.reshape(rows_padded, _LANES)
        layer_pow_sums.append(
            _layer_pow_sum(x, norm_p, tile_rows, tiles_per_split, num_splits))

    if require_pow:
        return sum(layer_pow_sums) / n_last_rows / norm_p
    if norm_p == 2.0:
        norms = [jnp.sqrt(s) for s in layer_pow_sums]
    elif norm_p == 1.0:
        norms = layer_pow_sums
    else:
        norms = [s ** (1.0 / norm_p) for s in layer_pow_sums]
    return sum(norms) / n_last_rows


if __name__ == "__main__":
    NORM_P = 2.0   # would come from config.loss.norm

    key = jax.random.PRNGKey(0)
    k1, k2, k3 = jax.random.split(key, 3)
    # Small shapes consistent with GCN ego embeddings (nodes x hidden=32);
    # different row counts exercise the per-layer padding path.
    embeddings = [
        0.1 * jax.random.normal(k1, (64, 32), jnp.float32),
        0.1 * jax.random.normal(k2, (48, 32), jnp.float32),
        0.1 * jax.random.normal(k3, (64, 32), jnp.float32),
    ]

    for require_pow in (False, True):
        # Force the Pallas path even at these tiny demo shapes
        # (small_threshold=0 disables the pure-JAX fast path).
        loss = emb_loss(embeddings, norm_p=NORM_P, require_pow=require_pow,
                        small_threshold=0)
        loss = jax.block_until_ready(loss)

        # Pure-JAX reference of the PyTorch EmbLoss semantics.
        if require_pow:
            ref = sum(jnp.sum(jnp.abs(e) ** NORM_P) for e in embeddings)
            ref = ref / embeddings[-1].shape[0] / NORM_P
        else:
            ref = sum(jnp.sum(jnp.abs(e) ** NORM_P) ** (1.0 / NORM_P)
                      for e in embeddings)
            ref = ref / embeddings[-1].shape[0]

        assert jnp.allclose(loss, ref, rtol=1e-5, atol=1e-6), \
            (require_pow, float(loss), float(ref))

        # Default wrapper (tiny-input fast path) must match too.
        loss_fast = jax.block_until_ready(
            emb_loss(embeddings, norm_p=NORM_P, require_pow=require_pow))
        assert jnp.allclose(loss_fast, ref, rtol=1e-5, atol=1e-6), \
            (require_pow, float(loss_fast), float(ref))

    print("KERNEL_OK")
</pallas_src>

<mosaic_0001>
module attributes {stable_mosaic.version = 11 : i64} {
  func.func @_pow_sum_kernel(%arg0: i32, %arg1: i32, %arg2: memref<16x128xf32, #tpu.memory_space<vmem>>, %arg3: memref<1x8x128xf32, #tpu.memory_space<vmem>>) attributes {dimension_semantics = [#tpu.dimension_semantics<parallel>, #tpu.dimension_semantics<arbitrary>], iteration_bounds = array<i64: 1, 1>, scalar_prefetch = 0 : i64, scratch_operands = 0 : i64, tpu.core_type = #tpu.core_type<tc>, window_params = [{transform_indices = @transform_0, window_bounds = array<i64: 16, 128>}, {transform_indices = @transform_1, window_bounds = array<i64: 1, 8, 128>}]} {
    %c0_i32 = arith.constant 0 : i32
    %0 = arith.cmpi eq, %arg1, %c0_i32 : i32
    %1 = arith.extui %0 : i1 to i32
    %c0_i32_0 = arith.constant 0 : i32
    %2 = arith.cmpi ne, %1, %c0_i32_0 : i32
    scf.if %2 {
      %cst_8 = arith.constant 0.000000e+00 : f32
      %11 = vector.broadcast %cst_8 : f32 to vector<1x8x128xf32>
      %c0_9 = arith.constant 0 : index
      %c0_10 = arith.constant 0 : index
      %c0_11 = arith.constant 0 : index
      %12 = vector.load %arg3[%c0_9, %c0_10, %c0_11] : memref<1x8x128xf32, #tpu.memory_space<vmem>>, vector<1x8x128xf32>
      tpu.vector_store %arg3[%c0_9, %c0_10, %c0_11], %11 {strides = array<i32>} : memref<1x8x128xf32, #tpu.memory_space<vmem>>, vector<1x8x128xf32>,
    } else {
    }
    %c0 = arith.constant 0 : index
    %c0_1 = arith.constant 0 : index
    %3 = vector.load %arg2[%c0, %c0_1] : memref<16x128xf32, #tpu.memory_space<vmem>>, vector<16x128xf32>
    %4 = arith.mulf %3, %3 : vector<16x128xf32>
    %5 = vector.shape_cast %4 : vector<16x128xf32> to vector<2x8x128xf32>
    %cst = arith.constant dense<0.000000e+00> : vector<8x128xf32>
    %6 = vector.multi_reduction <add>, %5, %cst [0] : vector<2x8x128xf32> to vector<8x128xf32>
    %c0_2 = arith.constant 0 : index
    %c0_3 = arith.constant 0 : index
    %c0_4 = arith.constant 0 : index
    %7 = vector.load %arg3[%c0_2, %c0_3, %c0_4] : memref<1x8x128xf32, #tpu.memory_space<vmem>>, vector<1x8x128xf32>
    %8 = vector.shape_cast %6 : vector<8x128xf32> to vector<1x8x128xf32>
    %9 = arith.addf %7, %8 : vector<1x8x128xf32>
    %c0_5 = arith.constant 0 : index
    %c0_6 = arith.constant 0 : index
    %c0_7 = arith.constant 0 : index
    %10 = vector.load %arg3[%c0_5, %c0_6, %c0_7] : memref<1x8x128xf32, #tpu.memory_space<vmem>>, vector<1x8x128xf32>
    tpu.vector_store %arg3[%c0_5, %c0_6, %c0_7], %9 {strides = array<i32>} : memref<1x8x128xf32, #tpu.memory_space<vmem>>, vector<1x8x128xf32>,
    return
  }
  func.func @transform_0(%arg0: i32, %arg1: i32) -> (i32, i32) {
    %c1_i32 = arith.constant 1 : i32
    %0 = arith.muli %arg0, %c1_i32 : i32
    %1 = arith.addi %0, %arg1 : i32
    %c0_i32 = arith.constant 0 : i32
    %c0_i32_0 = arith.constant 0 : i32
    return %1, %c0_i32 : i32, i32
  }
  func.func @transform_1(%arg0: i32, %arg1: i32) -> (i32, i32, i32) {
    %c0_i32 = arith.constant 0 : i32
    %c0_i32_0 = arith.constant 0 : i32
    %c0_i32_1 = arith.constant 0 : i32
    return %arg0, %c0_i32, %c0_i32_0 : i32, i32, i32
  }
}

</mosaic_0001>

<llo_original>
// kernel: tpu_custom_call.1
$region0: #{tpu_custom_call.1}
  #allocation0 [shape = 'u32[]', space=smem, size = 0x4, offset = 0x4, fixed_abs, tag = 'smem constant byte address 0x4 - core index']
  #allocation1 [shape = 'u32[144,128]{1,0:T(1,128)}', space=vmem, size = 0x12000, scoped, tag = 'internal scratch']
  %s0 = inlined_call_operand.hbm [shape: f32[16,128], index: 0, kind: input, shape index: {}]
  %s1 = inlined_call_operand.hbm [shape: f32[1,8,128], index: 1, kind: output, shape index: {}]
  %s2 = sld [smem:[#allocation0]]
  $region22: #{tpu_custom_call.1} parent=0
    _
  %s4 = ssub.s32 1, %s2
  %s5 = scalar_select 0, %s4, %s2
  $region1: #{tpu_custom_call.1} parent=0
    #allocation2 [shape = 'u8[8192]{0}', space=vmem, size = 0x2000, scoped, tag = 'input window, operand 0, single buffered']
    #allocation3 [shape = 's32[1]{0}', space=sflag, size = 0x4, scoped, tag = 'scoped memory for tpu_custom_call.1']
    #allocation4 [shape = 's32[1]{0}', space=sflag, size = 0x4, scoped, tag = 'scoped memory for tpu_custom_call.1']
    #allocation5 [shape = 'u8[4096]{0}', space=vmem, size = 0x1000, scoped, tag = 'output window, operand 0, single buffered']
    %6 = vsyncpa [#allocation3], 0
    %7 = vsyncpa [#allocation4], 0
    // Predicated region
    $region2: #{tpu_custom_call.1} parent=1 // pred_check
      _
    $region3: #{tpu_custom_call.1} parent=1 // pred_check_branch
      %9 = sbr.rel (0) target = $region5
    $region4: #{tpu_custom_call.1} parent=1 // pred_region
      %s10 = sadd.s32 0, 0
      %s11 = smul.u32 2, %s10
      %s13 = ssub.s32 256, 256
      %14 = vsyncadd [#allocation3], %s13
      %s15 = smul.addr %s11, 128
      %s16 = scalar_lea.hbm %s0, %s15
      %s17 = sshll.u32 [#allocation2], 4
      %s18 = int_to_ptr.vmem [resolvable:$true] %s17
      %23 = dma.hbm_to_vmem [thread:$0]  %s16, 256, %s18, [#allocation3], 128, 128, 8
    $region5: #{tpu_custom_call.1} parent=1 // pred_fallthru
      _
    // Predicated region
    $region6: #{tpu_custom_call.1} parent=1 // pred_check
      _
    $region7: #{tpu_custom_call.1} parent=1 // pred_check_branch
      %25 = sbr.rel (0) target = $region9
    $region8: #{tpu_custom_call.1} parent=1 // pred_region
      %26 = dma.done [#allocation3], 256
    $region9: #{tpu_custom_call.1} parent=1 // pred_fallthru
      _
    %s27 = sadd.s32 0, 0
    %s28 = smul.u32 2, %s27
    %p29 = scmp.eq.s32.totalorder 0, 0
    // Predicated region
    $region10: #{tpu_custom_call.1} parent=1 // pred_check
      %p30 = pneg %p29
    $region11: #{tpu_custom_call.1} parent=1 // pred_check_branch
      %32 = sbr.rel (%p30) target = $region13
    $region12: #{tpu_custom_call.1} parent=1 // pred_region
      %33 = vst [vmem:[#allocation5] sm:$0xff] 0.0
    $region13: #{tpu_custom_call.1} parent=1 // pred_fallthru
      _
    %v34 = vld [vmem:[#allocation2] sm:$0xff]
    %v35 = vld [vmem:[#allocation2 + $0x8] sm:$0xff]
    %v36 = vmul.f32 %v34, %v34
    %v37 = vmul.f32 %v35, %v35
    %v38 = vadd.f32 %v36, %v37
    %v39 = vld [vmem:[#allocation5] sm:$0xff]
    %v40 = vadd.f32 %v39, %v38
    %41 = vst [vmem:[#allocation5] sm:$0xff] %v40
    // Predicated region
    $region14: #{tpu_custom_call.1} parent=1 // pred_check
      _
    $region15: #{tpu_custom_call.1} parent=1 // pred_check_branch
      %43 = sbr.rel (0) target = $region17
    $region16: #{tpu_custom_call.1} parent=1 // pred_region
      %s45 = ssub.s32 128, 128
      %46 = vsyncadd [#allocation4], %s45
      %s48 = sshll.u32 [#allocation5], 4
      %s49 = int_to_ptr.vmem [resolvable:$true] %s48
      %51 = dma.vmem_to_hbm [thread:$0]  %s49, 128, %s1, [#allocation4]
    $region17: #{tpu_custom_call.1} parent=1 // pred_fallthru
      _
    // Predicated region
    $region18: #{tpu_custom_call.1} parent=1 // pred_check
      _
    $region19: #{tpu_custom_call.1} parent=1 // pred_check_branch
      %53 = sbr.rel (0) target = $region21
    $region20: #{tpu_custom_call.1} parent=1 // pred_region
      %54 = dma.done [#allocation4], 128
    $region21: #{tpu_custom_call.1} parent=1 // pred_fallthru
      _
    %55 = vsyncpa [#allocation3], 1
    %56 = vsyncpa [#allocation4], 1

</llo_original>
